<compile_context>
chip_gen: v6e
topology: v6e:2x2x1
jax: 0.10.0
libtpu: 0.0.40
codegen_flags: <defaults>
</compile_context>

<pallas_src>
import jax
import jax.numpy as jnp
from jax import lax
from jax.experimental import pallas as pl
from jax.experimental.pallas import tpu as pltpu

_LN_EPS = 1e-5  # torch.nn.LayerNorm default


def _patch_merged_kernel(pix_ref, wpp_ref, sb_ref, o_ref):
    # pix_ref block: (1, TL, 4C) — raw pixels of each 2x2 patch, token-major,
    # feature order (pixel position p in {a,b,c,d}, channel c), p-major.
    t = pix_ref[0]                                           # (TL, 4C) f32
    c4 = t.shape[-1]
    c = c4 // 4

    # LayerNorm stats of the (virtual) Haar-band token, from raw pixels:
    #   sum_f band_f   = 2 * sum_c a_c            (row sums of the Haar matrix)
    #   sum_f band_f^2 = sum_{p,c} pix_{p,c}^2    (Haar rows are orthonormal)
    mu = jnp.sum(t[:, :c], axis=-1, keepdims=True) * (2.0 / c4)   # (TL, 1)
    ssq = jnp.sum(t * t, axis=-1, keepdims=True)                  # (TL, 1)
    var = ssq * (1.0 / c4) - mu * mu
    inv_std = lax.rsqrt(var + _LN_EPS)                            # EUP

    # Haar + LN-scale folded into the weights: single K=4C MXU contraction.
    acc = jnp.dot(t, wpp_ref[...], preferred_element_type=jnp.float32)  # (TL, 2C)

    s = sb_ref[0:1, :]     # (1, 2C) = gamma @ w_red
    b0 = sb_ref[1:2, :]    # (1, 2C) = beta  @ w_red
    o_ref[0] = (inv_std * (acc - mu * s) + b0).astype(o_ref.dtype)


def patch_merged(x, gamma, beta, w_red, *, token_tile=512):
    """PatchMerged forward.

    x:      (B, C, H, W)  float32, NCHW (H, W even)
    gamma:  (4C,)  LayerNorm weight
    beta:   (4C,)  LayerNorm bias
    w_red:  (4C, 2C)  reduction matrix (== torch Linear weight.T)
    returns (out, H//2, W//2) with out: (B, (H//2)*(W//2), 2C)
    """
    B, C, H, W = x.shape
    # TODO(synk): odd H/W (pywt 'symmetric' boundary padding) is not handled.
    assert H % 2 == 0 and W % 2 == 0, "H and W must be even"
    Hh, Wh = H // 2, W // 2
    L = Hh * Wh
    C4, C2 = 4 * C, 2 * C

    # Layout plumbing (see TODO above): (B, C, H, W) -> (B, L, 4C),
    # feature order (pixel p = 2*ph + pw, channel c).
    pix = (x.reshape(B, C, Hh, 2, Wh, 2)
             .transpose(0, 2, 4, 3, 5, 1)          # (B, Hh, Wh, ph, pw, C)
             .reshape(B, L, C4))

    # Fold Haar + LayerNorm affine into the reduction weights (exact rewrite).
    sgn = jnp.array([[1.,  1.,  1.,  1.],          # LL
                     [1.,  1., -1., -1.],          # LH
                     [1., -1.,  1., -1.],          # HL
                     [1., -1., -1.,  1.]],         # HH   [band k, pixel p]
                    dtype=jnp.float32)
    wg = (w_red * gamma[:, None]).reshape(4, C, C2)                  # [k, c, out]
    wpp = (0.5 * jnp.einsum('kp,kco->pco', sgn, wg)).reshape(C4, C2)  # [p,c]-major
    sb = jnp.stack([gamma @ w_red, beta @ w_red], axis=0)            # (2, 2C)

    # Fixed token tile; ragged tail handled by Pallas block masking (cdiv grid).
    tl = L if L <= token_tile else token_tile
    grid = (B, pl.cdiv(L, tl))

    out = pl.pallas_call(
        _patch_merged_kernel,
        out_shape=jax.ShapeDtypeStruct((B, L, C2), jnp.float32),
        grid=grid,
        in_specs=[
            pl.BlockSpec((1, tl, C4), lambda b, l: (b, l, 0)),   # pixels
            pl.BlockSpec((C4, C2), lambda b, l: (0, 0)),         # folded weights
            pl.BlockSpec((2, C2), lambda b, l: (0, 0)),          # [gamma@W ; beta@W]
        ],
        out_specs=pl.BlockSpec((1, tl, C2), lambda b, l: (b, l, 0)),
        compiler_params=pltpu.CompilerParams(
            dimension_semantics=("parallel", "parallel"),
            vmem_limit_bytes=32 * 1024 * 1024),
    )(pix, wpp, sb)
    return out, Hh, Wh


def _patch_merged_ref(x, gamma, beta, w_red, eps=_LN_EPS):
    """Pure-JAX reference of the PyTorch module's forward."""
    B, C, H, W = x.shape
    a = x[:, :, 0::2, 0::2]
    b = x[:, :, 0::2, 1::2]
    c = x[:, :, 1::2, 0::2]
    d = x[:, :, 1::2, 1::2]
    ll = 0.5 * (a + b + c + d)
    lh = 0.5 * (a + b - c - d)
    hl = 0.5 * (a - b + c - d)
    hh = 0.5 * (a - b - c + d)
    cat = jnp.concatenate([ll, lh, hl, hh], axis=1)        # (B, 4C, H/2, W/2)
    tok = cat.reshape(B, 4 * C, -1).transpose(0, 2, 1)     # (B, L, 4C)
    mu = tok.mean(-1, keepdims=True)
    var = jnp.mean((tok - mu) ** 2, -1, keepdims=True)
    y = (tok - mu) / jnp.sqrt(var + eps) * gamma + beta
    return y @ w_red


if __name__ == "__main__":
    B, C, H, W = 2, 4, 16, 16          # dim=4 -> LayerNorm(16), Linear(16, 8)
    key = jax.random.PRNGKey(0)
    kx, kg, kb, kw = jax.random.split(key, 4)
    x = jax.random.normal(kx, (B, C, H, W), dtype=jnp.float32)
    gamma = 1.0 + 0.1 * jax.random.normal(kg, (4 * C,), dtype=jnp.float32)
    beta = 0.1 * jax.random.normal(kb, (4 * C,), dtype=jnp.float32)
    w_red = 0.1 * jax.random.normal(kw, (4 * C, 2 * C), dtype=jnp.float32)

    y, hh, ww = patch_merged(x, gamma, beta, w_red)
    y = jax.block_until_ready(y)

    y_ref = _patch_merged_ref(x, gamma, beta, w_red)
    assert y.shape == (B, (H // 2) * (W // 2), 2 * C), y.shape
    assert hh == H // 2 and ww == W // 2
    assert jnp.allclose(y, y_ref, atol=1e-4, rtol=1e-4), \
        float(jnp.abs(y - y_ref).max())

    print("KERNEL_OK")
</pallas_src>

<mosaic_0001>
module attributes {stable_mosaic.version = 11 : i64} {
  func.func @_patch_merged_kernel(%arg0: i32, %arg1: i32, %arg2: memref<1x64x16xf32, #tpu.memory_space<vmem>>, %arg3: memref<16x8xf32, #tpu.memory_space<vmem>>, %arg4: memref<2x8xf32, #tpu.memory_space<vmem>>, %arg5: memref<1x64x8xf32, #tpu.memory_space<vmem>>) attributes {dimension_semantics = [#tpu.dimension_semantics<parallel>, #tpu.dimension_semantics<parallel>], iteration_bounds = array<i64: 2, 1>, scalar_prefetch = 0 : i64, scratch_operands = 0 : i64, tpu.core_type = #tpu.core_type<tc>, window_params = [{transform_indices = @transform_0, window_bounds = array<i64: 1, 64, 16>}, {pipeline_mode = #tpu.pipeline_mode<synchronous>, transform_indices = @transform_1, window_bounds = array<i64: 16, 8>}, {pipeline_mode = #tpu.pipeline_mode<synchronous>, transform_indices = @transform_2, window_bounds = array<i64: 2, 8>}, {transform_indices = @transform_3, window_bounds = array<i64: 1, 64, 8>}]} {
    %c0 = arith.constant 0 : index
    %c0_0 = arith.constant 0 : index
    %c0_1 = arith.constant 0 : index
    %0 = vector.load %arg2[%c0, %c0_0, %c0_1] : memref<1x64x16xf32, #tpu.memory_space<vmem>>, vector<1x64x16xf32>
    %1 = vector.shape_cast %0 : vector<1x64x16xf32> to vector<64x16xf32>
    %2 = vector.extract_strided_slice %1 {offsets = [0, 0], sizes = [64, 4], strides = [1, 1]} : vector<64x16xf32> to vector<64x4xf32>
    %cst = arith.constant dense<0.000000e+00> : vector<64xf32>
    %3 = vector.multi_reduction <add>, %2, %cst [1] : vector<64x4xf32> to vector<64xf32>
    %4 = vector.shape_cast %3 : vector<64xf32> to vector<64x1xf32>
    %cst_2 = arith.constant 1.250000e-01 : f32
    %5 = vector.broadcast %cst_2 : f32 to vector<64x1xf32>
    %6 = arith.mulf %4, %5 : vector<64x1xf32>
    %7 = arith.mulf %1, %1 : vector<64x16xf32>
    %cst_3 = arith.constant dense<0.000000e+00> : vector<64xf32>
    %8 = vector.multi_reduction <add>, %7, %cst_3 [1] : vector<64x16xf32> to vector<64xf32>
    %9 = vector.shape_cast %8 : vector<64xf32> to vector<64x1xf32>
    %cst_4 = arith.constant 6.250000e-02 : f32
    %10 = vector.broadcast %cst_4 : f32 to vector<64x1xf32>
    %11 = arith.mulf %9, %10 : vector<64x1xf32>
    %12 = arith.mulf %6, %6 : vector<64x1xf32>
    %13 = arith.subf %11, %12 : vector<64x1xf32>
    %cst_5 = arith.constant 9.99999974E-6 : f32
    %14 = vector.broadcast %cst_5 : f32 to vector<64x1xf32>
    %15 = arith.addf %13, %14 : vector<64x1xf32>
    %16 = math.rsqrt %15 : vector<64x1xf32>
    %c0_6 = arith.constant 0 : index
    %c0_7 = arith.constant 0 : index
    %17 = vector.load %arg3[%c0_6, %c0_7] : memref<16x8xf32, #tpu.memory_space<vmem>>, vector<16x8xf32>
    %cst_8 = arith.constant dense<0.000000e+00> : vector<64x8xf32>
    %18 = tpu.matmul %1, %17, %cst_8 {dimension_numbers = #tpu.dot_dimension_numbers<[1], [0], [0], [1], [0, 0, 1, 1], [], []>} : vector<64x16xf32>, vector<16x8xf32>, vector<64x8xf32> -> vector<64x8xf32>
    %c0_9 = arith.constant 0 : index
    %c0_10 = arith.constant 0 : index
    %19 = vector.load %arg4[%c0_9, %c0_10] : memref<2x8xf32, #tpu.memory_space<vmem>>, vector<1x8xf32>
    %c1 = arith.constant 1 : index
    %c0_11 = arith.constant 0 : index
    %20 = vector.load %arg4[%c1, %c0_11] : memref<2x8xf32, #tpu.memory_space<vmem>>, vector<1x8xf32>
    %21 = vector.broadcast %6 : vector<64x1xf32> to vector<64x8xf32>
    %22 = vector.broadcast %19 : vector<1x8xf32> to vector<64x8xf32>
    %23 = arith.mulf %21, %22 : vector<64x8xf32>
    %24 = arith.subf %18, %23 : vector<64x8xf32>
    %25 = vector.broadcast %16 : vector<64x1xf32> to vector<64x8xf32>
    %26 = arith.mulf %25, %24 : vector<64x8xf32>
    %27 = vector.broadcast %20 : vector<1x8xf32> to vector<64x8xf32>
    %28 = arith.addf %26, %27 : vector<64x8xf32>
    %c0_12 = arith.constant 0 : index
    %c0_13 = arith.constant 0 : index
    %c0_14 = arith.constant 0 : index
    %29 = vector.load %arg5[%c0_12, %c0_13, %c0_14] : memref<1x64x8xf32, #tpu.memory_space<vmem>>, vector<1x64x8xf32>
    %30 = vector.shape_cast %29 : vector<1x64x8xf32> to vector<64x8xf32>
    %31 = vector.shape_cast %28 : vector<64x8xf32> to vector<1x64x8xf32>
    tpu.vector_store %arg5[%c0_12, %c0_13, %c0_14], %31 {strides = array<i32>} : memref<1x64x8xf32, #tpu.memory_space<vmem>>, vector<1x64x8xf32>,
    return
  }
  func.func @transform_0(%arg0: i32, %arg1: i32) -> (i32, i32, i32) {
    %c0_i32 = arith.constant 0 : i32
    %c0_i32_0 = arith.constant 0 : i32
    return %arg0, %arg1, %c0_i32 : i32, i32, i32
  }
  func.func @transform_1(%arg0: i32, %arg1: i32) -> (i32, i32) {
    %c0_i32 = arith.constant 0 : i32
    %c0_i32_0 = arith.constant 0 : i32
    %c0_i32_1 = arith.constant 0 : i32
    return %c0_i32, %c0_i32_0 : i32, i32
  }
  func.func @transform_2(%arg0: i32, %arg1: i32) -> (i32, i32) {
    %c0_i32 = arith.constant 0 : i32
    %c0_i32_0 = arith.constant 0 : i32
    %c0_i32_1 = arith.constant 0 : i32
    return %c0_i32, %c0_i32_0 : i32, i32
  }
  func.func @transform_3(%arg0: i32, %arg1: i32) -> (i32, i32, i32) {
    %c0_i32 = arith.constant 0 : i32
    %c0_i32_0 = arith.constant 0 : i32
    return %arg0, %arg1, %c0_i32 : i32, i32, i32
  }
}

</mosaic_0001>

<llo_original>
// kernel: tpu_custom_call.1
$region0: #{tpu_custom_call.1}
  #allocation0 [shape = 'u32[]', space=smem, size = 0x4, offset = 0x4, fixed_abs, tag = 'smem constant byte address 0x4 - core index']
  #allocation1 [shape = 'u32[144,128]{1,0:T(1,128)}', space=vmem, size = 0x12000, scoped, tag = 'internal scratch']
  %s0 = inlined_call_operand.vmem [shape: f32[2,64,16], index: 0, kind: input, shape index: {}]
  %s1 = inlined_call_operand.vmem [shape: f32[16,8], index: 1, kind: input, shape index: {}]
  %s2 = inlined_call_operand.vmem [shape: f32[2,8], index: 2, kind: input, shape index: {}]
  %s3 = inlined_call_operand.vmem [shape: f32[2,64,8], index: 3, kind: output, shape index: {}]
  %s4 = sld [smem:[#allocation0]]
  $region45: #{tpu_custom_call.1} parent=0
    _
  %s6 = ssub.s32 1, %s4
  %s7 = scalar_select 0, %s6, %s4
  loop: start=0, step=1, limit=4
  $region2: #{tpu_custom_call.1} parent=0 // loop_pre_header
    _
  $region3: #{tpu_custom_call.1} parent=0 // loop_header
    %s9 = sphi 0, %s13
    %p10 = scmp.ge.s32.totalorder %s9, 4
    %s16 = sphi 0, %s28
    %s17 = sphi 0, %s24
    %s18 = sphi 0, %s16
    %s19 = sphi 0, %s17
    %s20 = sphi 0, %s18
    %s21 = sphi 0, %s19
    %s33 = sphi 0, %s35
    %s36 = sphi 0, %s33
    %s37 = sphi 0, %s36
    %s53 = sphi 0, %s37
    %s57 = sphi 0, %s57
    %s59 = sphi 0, %s57
    %s60 = sphi 0, %s59
    %s74 = sphi 0, %s60
    %s78 = sphi 0, %s78
    %s80 = sphi 0, %s78
    %s81 = sphi 0, %s80
    %s95 = sphi 0, %s81
    %s103 = sphi 0, %s105
    %s106 = sphi 0, %s103
    %s107 = sphi 0, %s106
    %s123 = sphi 0, %s107
  $region4: #{tpu_custom_call.1} parent=0 // loop_header_branch
    %12 = sbr.rel (%p10) target = $region8
  $region5: #{tpu_custom_call.1} parent=0 // loop_body
    %s14 = ssub.s32 %s9, 1
    %s15 = ssub.s32 %s9, 2
    %s22 = sadd.s32 1, %s17
    %p23 = scmp.ge.s32.totalorder %s22, 1
    %s24 = scalar_select %p23, 0, %s22
    %s25 = sadd.s32 1, %s16
    %s26 = scalar_select %p23, %s25, %s16
    %p27 = scmp.ge.s32.totalorder %s26, 2
    %s28 = scalar_select %p27, 0, %s26
    %s29 = ssub.s32 %s16, %s28
    %s30 = ssub.s32 %s17, %s24
    %s31 = sor.u32 %s29, %s30
    %p32 = scmp.eq.s32.totalorder %s31, 0
    %s34 = sadd.s32 %s33, 1
    %s35 = scalar_select %p32, %s33, %s34
    %p38 = pneg %p32
    %p39 = scmp.eq.s32.totalorder %s9, 1
    %p40 = por %p38, %p39
    %p41 = scmp.ne.s32.totalorder %s33, %s36
    %p42 = scmp.eq.s32.totalorder %s9, 0
    %p43 = por %p41, %p42
    %p44 = scmp.ne.s32.totalorder %s33, %s36
    %p45 = scmp.eq.s32.totalorder %s14, 1
    %p46 = por %p44, %p45
    %p47 = scmp.ne.s32.totalorder %s36, %s37
    %p48 = scmp.eq.s32.totalorder %s14, 0
    %p49 = por %p47, %p48
    %p50 = scmp.ne.s32.totalorder %s36, %s37
    %p51 = scmp.eq.s32.totalorder %s15, 1
    %p52 = por %p50, %p51
    %p54 = scmp.ne.s32.totalorder %s37, %s53
    %p55 = scmp.eq.s32.totalorder %s15, 0
    %p56 = por %p54, %p55
    %s58 = sadd.s32 %s57, 1
    %p61 = scmp.eq.s32.totalorder %s9, 1
    %p62 = scmp.ne.s32.totalorder %s57, %s59
    %p63 = scmp.eq.s32.totalorder %s9, 0
    %p64 = por %p62, %p63
    %p65 = scmp.ne.s32.totalorder %s57, %s59
    %p66 = scmp.eq.s32.totalorder %s14, 1
    %p67 = por %p65, %p66
    %p68 = scmp.ne.s32.totalorder %s59, %s60
    %p69 = scmp.eq.s32.totalorder %s14, 0
    %p70 = por %p68, %p69
    %p71 = scmp.ne.s32.totalorder %s59, %s60
    %p72 = scmp.eq.s32.totalorder %s15, 1
    %p73 = por %p71, %p72
    %p75 = scmp.ne.s32.totalorder %s60, %s74
    %p76 = scmp.eq.s32.totalorder %s15, 0
    %p77 = por %p75, %p76
    %s79 = sadd.s32 %s78, 1
    %p82 = scmp.eq.s32.totalorder %s9, 1
    %p83 = scmp.ne.s32.totalorder %s78, %s80
    %p84 = scmp.eq.s32.totalorder %s9, 0
    %p85 = por %p83, %p84
    %p86 = scmp.ne.s32.totalorder %s78, %s80
    %p87 = scmp.eq.s32.totalorder %s14, 1
    %p88 = por %p86, %p87
    %p89 = scmp.ne.s32.totalorder %s80, %s81
    %p90 = scmp.eq.s32.totalorder %s14, 0
    %p91 = por %p89, %p90
    %p92 = scmp.ne.s32.totalorder %s80, %s81
    %p93 = scmp.eq.s32.totalorder %s15, 1
    %p94 = por %p92, %p93
    %p96 = scmp.ne.s32.totalorder %s81, %s95
    %p97 = scmp.eq.s32.totalorder %s15, 0
    %p98 = por %p96, %p97
    %s99 = ssub.s32 %s16, %s28
    %s100 = ssub.s32 %s17, %s24
    %s101 = sor.u32 %s99, %s100
    %p102 = scmp.eq.s32.totalorder %s101, 0
    %s104 = sadd.s32 %s103, 1
    %s105 = scalar_select %p102, %s103, %s104
    %p108 = pneg %p102
    %p109 = scmp.eq.s32.totalorder %s9, 1
    %p110 = por %p108, %p109
    %p111 = scmp.ne.s32.totalorder %s103, %s106
    %p112 = scmp.eq.s32.totalorder %s9, 0
    %p113 = por %p111, %p112
    %p114 = scmp.ne.s32.totalorder %s103, %s106
    %p115 = scmp.eq.s32.totalorder %s14, 1
    %p116 = por %p114, %p115
    %p117 = scmp.ne.s32.totalorder %s106, %s107
    %p118 = scmp.eq.s32.totalorder %s14, 0
    %p119 = por %p117, %p118
    %p120 = scmp.ne.s32.totalorder %s106, %s107
    %p121 = scmp.eq.s32.totalorder %s15, 1
    %p122 = por %p120, %p121
    %p124 = scmp.ne.s32.totalorder %s107, %s123
    %p125 = scmp.eq.s32.totalorder %s15, 0
    %p126 = por %p124, %p125
    %p127 = scmp.le.s32.totalorder 1, %s9
    %p128 = scmp.lt.s32.totalorder %s9, 3
    %p129 = pnand %p127, %p128
    %p130 = pneg %p129
    // Predicated region
    $region9: #{tpu_custom_call.1} parent=5 // pred_check
      _
    $region10: #{tpu_custom_call.1} parent=5 // pred_check_branch
      %132 = sbr.rel (%p129) target = $region12
    $region11: #{tpu_custom_call.1} parent=5 // pred_region
      %s133 = ssub.s32 %s9, 1
      // Predicated region
      $region13: #{tpu_custom_call.1} parent=11 // pred_check
        %p134 = pneg %p70
      $region14: #{tpu_custom_call.1} parent=11 // pred_check_branch
        %136 = sbr.rel (%p134) target = $region16
      $region15: #{tpu_custom_call.1} parent=11 // pred_region
        _
      $region16: #{tpu_custom_call.1} parent=11 // pred_fallthru
        _
      // Predicated region
      $region17: #{tpu_custom_call.1} parent=11 // pred_check
        %p137 = pneg %p91
      $region18: #{tpu_custom_call.1} parent=11 // pred_check_branch
        %139 = sbr.rel (%p137) target = $region20
      $region19: #{tpu_custom_call.1} parent=11 // pred_region
        _
      $region20: #{tpu_custom_call.1} parent=11 // pred_fallthru
        _
    $region12: #{tpu_custom_call.1} parent=5 // pred_fallthru
      _
    %p140 = scmp.lt.s32.totalorder %s9, 2
    // Predicated region
    $region21: #{tpu_custom_call.1} parent=5 // pred_check
      %p141 = pneg %p140
    $region22: #{tpu_custom_call.1} parent=5 // pred_check_branch
      %143 = sbr.rel (%p141) target = $region24
    $region23: #{tpu_custom_call.1} parent=5 // pred_region
      // Predicated region
      $region25: #{tpu_custom_call.1} parent=23 // pred_check
        %p144 = pneg %p43
      $region26: #{tpu_custom_call.1} parent=23 // pred_check_branch
        %146 = sbr.rel (%p144) target = $region28
      $region27: #{tpu_custom_call.1} parent=23 // pred_region
        %s147 = smul.u32 8, %s17
        %p148 = scmp.lt.s32.totalorder %s16, 1
        %s149 = scalar_select %p148, %s16, 1
        %p150 = scmp.lt.s32.totalorder %s147, 7
        %s151 = scalar_select %p150, %s147, 7
        %s152 = smul.addr %s149, 8
        %s153 = sadd.s32 %s151, %s152
        %s154 = smul.addr %s153, 8
        %s155 = scalar_lea.vmem %s0, %s154
        %s156 = smul.u32 8, %s17
      $region28: #{tpu_custom_call.1} parent=23 // pred_fallthru
        _
    $region24: #{tpu_custom_call.1} parent=5 // pred_fallthru
      _
    %p157 = scmp.le.s32.totalorder 1, %s9
    %p158 = scmp.lt.s32.totalorder %s9, 3
    %p159 = pnand %p157, %p158
    %p160 = pneg %p159
    // Predicated region
    $region29: #{tpu_custom_call.1} parent=5 // pred_check
      _
    $region30: #{tpu_custom_call.1} parent=5 // pred_check_branch
      %162 = sbr.rel (%p159) target = $region32
    $region31: #{tpu_custom_call.1} parent=5 // pred_region
      %s163 = ssub.s32 %s9, 1
      %s164 = smul.u32 8, %s19
      %p165 = scmp.lt.s32.totalorder %s18, 1
      %s166 = scalar_select %p165, %s18, 1
      %p167 = scmp.lt.s32.totalorder %s164, 7
      %s168 = scalar_select %p167, %s164, 7
      %s169 = smul.addr %s166, 8
      %s170 = sadd.s32 %s168, %s169
      %s171 = smul.addr %s170, 8
      %s172 = scalar_lea.vmem %s0, %s171
      %p173 = pneg %p49
      %p174 = pneg %p46
      %p175 = pneg %p70
      %p176 = pneg %p67
      %p177 = pneg %p91
      %p178 = pneg %p88
      %p179 = pneg %p119
      %p180 = pneg %p116
      %s181 = smul.u32 8, %s19
      %p182 = scmp.lt.s32.totalorder %s18, 1
      %s183 = scalar_select %p182, %s18, 1
      %p184 = scmp.lt.s32.totalorder %s181, 7
      %s185 = scalar_select %p184, %s181, 7
      %s186 = smul.addr %s183, 8
      %s187 = sadd.s32 %s185, %s186
      %s188 = smul.addr %s187, 8
      %s189 = scalar_lea.vmem %s3, %s188
      %s190 = smul.u32 8, %s19
      %p191 = scmp.lt.s32.totalorder %s18, 1
      %s192 = scalar_select %p191, %s18, 1
      %p193 = scmp.lt.s32.totalorder %s190, 7
      %s194 = scalar_select %p193, %s190, 7
      %s195 = smul.addr %s192, 8
      %s196 = sadd.s32 %s194, %s195
      %s197 = smul.addr %s196, 8
      %s198 = scalar_lea.vmem %s0, %s197
      %s199 = smul.u32 8, %s19
      %s200 = smul.u32 8, %s19
      %p201 = scmp.lt.s32.totalorder %s18, 1
      %s202 = scalar_select %p201, %s18, 1
      %p203 = scmp.lt.s32.totalorder %s200, 7
      %s204 = scalar_select %p203, %s200, 7
      %s205 = smul.addr %s202, 8
      %s206 = sadd.s32 %s204, %s205
      %s207 = smul.addr %s206, 8
      %s208 = scalar_lea.vmem %s3, %s207
      %s209 = smul.u32 8, %s19
      %v210 = vld [vmem:[%s198] sm:$0xff]
      %v211 = vld [vmem:[%s198 + $0x8] sm:$0xff]
      %v212 = vld [vmem:[%s198 + $0x10] sm:$0xff]
      %v213 = vld [vmem:[%s198 + $0x18] sm:$0xff]
      %v214 = vld [vmem:[%s198 + $0x20] sm:$0xff]
      %v215 = vld [vmem:[%s198 + $0x28] sm:$0xff]
      %v216 = vld [vmem:[%s198 + $0x30] sm:$0xff]
      %v217 = vld [vmem:[%s198 + $0x38] sm:$0xff]
      %vm218 = vcmask 31744
      %v219 = vsel %vm218, %v210, 0.0
      %220 = vadd.xlane.f32.xlu0 %v219
      %v221 = vpop.xlane.xlu0 %220
      %v222 = vsel %vm218, %v211, 0.0
      %223 = vadd.xlane.f32.xlu0 %v222
      %v224 = vpop.xlane.xlu0 %223
      %v225 = vsel %vm218, %v212, 0.0
      %226 = vadd.xlane.f32.xlu0 %v225
      %v227 = vpop.xlane.xlu0 %226
      %v228 = vsel %vm218, %v213, 0.0
      %229 = vadd.xlane.f32.xlu0 %v228
      %v230 = vpop.xlane.xlu0 %229
      %v231 = vsel %vm218, %v214, 0.0
      %232 = vadd.xlane.f32.xlu0 %v231
      %v233 = vpop.xlane.xlu0 %232
      %v234 = vsel %vm218, %v215, 0.0
      %235 = vadd.xlane.f32.xlu0 %v234
      %v236 = vpop.xlane.xlu0 %235
      %v237 = vsel %vm218, %v216, 0.0
      %238 = vadd.xlane.f32.xlu0 %v237
      %v239 = vpop.xlane.xlu0 %238
      %v240 = vsel %vm218, %v217, 0.0
      %241 = vadd.xlane.f32.xlu0 %v240
      %v242 = vpop.xlane.xlu0 %241
      %v243 = vmul.f32 %v221, 0.125
      %v244 = vmul.f32 %v224, 0.125
      %v245 = vmul.f32 %v227, 0.125
      %v246 = vmul.f32 %v230, 0.125
      %v247 = vmul.f32 %v233, 0.125
      %v248 = vmul.f32 %v236, 0.125
      %v249 = vmul.f32 %v239, 0.125
      %v250 = vmul.f32 %v242, 0.125
      %v251 = vmul.f32 %v210, %v210
      %v252 = vmul.f32 %v211, %v211
      %v253 = vmul.f32 %v212, %v212
      %v254 = vmul.f32 %v213, %v213
      %v255 = vmul.f32 %v214, %v214
      %v256 = vmul.f32 %v215, %v215
      %v257 = vmul.f32 %v216, %v216
      %v258 = vmul.f32 %v217, %v217
      %vm259 = vcmask 130048
      %v260 = vsel %vm259, %v251, 0.0
      %261 = vadd.xlane.f32.xlu0 %v260
      %v262 = vpop.xlane.xlu0 %261
      %v263 = vsel %vm259, %v252, 0.0
      %264 = vadd.xlane.f32.xlu0 %v263
      %v265 = vpop.xlane.xlu0 %264
      %v266 = vsel %vm259, %v253, 0.0
      %267 = vadd.xlane.f32.xlu0 %v266
      %v268 = vpop.xlane.xlu0 %267
      %v269 = vsel %vm259, %v254, 0.0
      %270 = vadd.xlane.f32.xlu0 %v269
      %v271 = vpop.xlane.xlu0 %270
      %v272 = vsel %vm259, %v255, 0.0
      %273 = vadd.xlane.f32.xlu0 %v272
      %v274 = vpop.xlane.xlu0 %273
      %v275 = vsel %vm259, %v256, 0.0
      %276 = vadd.xlane.f32.xlu0 %v275
      %v277 = vpop.xlane.xlu0 %276
      %v278 = vsel %vm259, %v257, 0.0
      %279 = vadd.xlane.f32.xlu0 %v278
      %v280 = vpop.xlane.xlu0 %279
      %v281 = vsel %vm259, %v258, 0.0
      %282 = vadd.xlane.f32.xlu0 %v281
      %v283 = vpop.xlane.xlu0 %282
      %v284 = vmul.f32 %v262, 0.0625
      %v285 = vmul.f32 %v265, 0.0625
      %v286 = vmul.f32 %v268, 0.0625
      %v287 = vmul.f32 %v271, 0.0625
      %v288 = vmul.f32 %v274, 0.0625
      %v289 = vmul.f32 %v277, 0.0625
      %v290 = vmul.f32 %v280, 0.0625
      %v291 = vmul.f32 %v283, 0.0625
      %v292 = vmul.f32 %v243, %v243
      %v293 = vmul.f32 %v244, %v244
      %v294 = vmul.f32 %v245, %v245
      %v295 = vmul.f32 %v246, %v246
      %v296 = vmul.f32 %v247, %v247
      %v297 = vmul.f32 %v248, %v248
      %v298 = vmul.f32 %v249, %v249
      %v299 = vmul.f32 %v250, %v250
      %v300 = vsub.f32 %v284, %v292
      %v301 = vsub.f32 %v285, %v293
      %v302 = vsub.f32 %v286, %v294
      %v303 = vsub.f32 %v287, %v295
      %v304 = vsub.f32 %v288, %v296
      %v305 = vsub.f32 %v289, %v297
      %v306 = vsub.f32 %v290, %v298
      %v307 = vsub.f32 %v291, %v299
      %v308 = vadd.f32 %v300, 1e-05
      %v309 = vadd.f32 %v301, 1e-05
      %v310 = vadd.f32 %v302, 1e-05
      %v311 = vadd.f32 %v303, 1e-05
      %v312 = vadd.f32 %v304, 1e-05
      %v313 = vadd.f32 %v305, 1e-05
      %v314 = vadd.f32 %v306, 1e-05
      %v315 = vadd.f32 %v307, 1e-05
      %v316 = vrsqrt.pop %v308
      %v317 = vrsqrt.pop %v309
      %v318 = vrsqrt.pop %v310
      %v319 = vrsqrt.pop %v311
      %v320 = vrsqrt.pop %v312
      %v321 = vrsqrt.pop %v313
      %v322 = vrsqrt.pop %v314
      %v323 = vrsqrt.pop %v315
      %v324 = vld [vmem:[%s1] sm:$0xff]
      %v325 = vld [vmem:[%s1 + $0x8] sm:$0xff]
      %v327 = vsel %vm259, %v210, 0
      %v330 = vsel %vm259, %v211, 0
      %v333 = vsel %vm259, %v212, 0
      %v336 = vsel %vm259, %v213, 0
      %v339 = vsel %vm259, %v214, 0
      %v342 = vsel %vm259, %v215, 0
      %v345 = vsel %vm259, %v216, 0
      %v348 = vsel %vm259, %v217, 0
      %350 = vmatprep.subr.mxu0 0.0
      %351 = vmatpush1.msra.mxu0 0.0
      %352 = vmatprep.subr.mxu0 0.0
      %353 = vmatpush1.msra.mxu0 0.0
      %354 = vmatprep.subr.mxu0 0.0
      %355 = vmatpush1.msra.mxu0 0.0
      %356 = vmatprep.subr.mxu0 0.0
      %357 = vmatpush1.msra.mxu0 0.0
      %358 = vmatprep.subr.mxu0 0.0
      %359 = vmatpush1.msra.mxu0 0.0
      %360 = vmatprep.subr.mxu0 0.0
      %361 = vmatpush1.msra.mxu0 0.0
      %362 = vmatprep.subr.mxu0 0.0
      %363 = vmatpush1.msra.mxu0 0.0
      %364 = vmatprep.subr.mxu0 0.0
      %365 = vmatpush1.msra.mxu0 0.0
      %366 = vmatprep.subr.mxu0 0.0
      %367 = vmatpush1.msra.mxu0 0.0
      %368 = vmatprep.subr.mxu0 0.0
      %369 = vmatpush1.msra.mxu0 0.0
      %370 = vmatprep.subr.mxu0 0.0
      %371 = vmatpush1.msra.mxu0 0.0
      %372 = vmatprep.subr.mxu0 0.0
      %373 = vmatpush1.msra.mxu0 0.0
      %374 = vmatprep.subr.mxu0 0.0
      %375 = vmatpush1.msra.mxu0 0.0
      %376 = vmatprep.subr.mxu0 0.0
      %377 = vmatpush1.msra.mxu0 0.0
      %378 = vmatprep.subr.mxu0 0.0
      %379 = vmatpush1.msra.mxu0 %v325
      %380 = vmatprep.subr.mxu0 0.0
      %381 = vmatpush1.msra.mxu0 %v324
      %382 = vmatprep.subr.mxu0 0.0
      %383 = vmatpush2.msra.mxu0 0.0
      %384 = vmatprep.subr.mxu0 0.0
      %385 = vmatpush2.msra.mxu0 0.0
      %386 = vmatprep.subr.mxu0 0.0
      %387 = vmatpush2.msra.mxu0 0.0
      %388 = vmatprep.subr.mxu0 0.0
      %389 = vmatpush2.msra.mxu0 0.0
      %390 = vmatprep.subr.mxu0 0.0
      %391 = vmatpush2.msra.mxu0 0.0
      %392 = vmatprep.subr.mxu0 0.0
      %393 = vmatpush2.msra.mxu0 0.0
      %394 = vmatprep.subr.mxu0 0.0
      %395 = vmatpush2.msra.mxu0 0.0
      %396 = vmatprep.subr.mxu0 0.0
      %397 = vmatpush2.msra.mxu0 0.0
      %398 = vmatprep.subr.mxu0 0.0
      %399 = vmatpush2.msra.mxu0 0.0
      %400 = vmatprep.subr.mxu0 0.0
      %401 = vmatpush2.msra.mxu0 0.0
      %402 = vmatprep.subr.mxu0 0.0
      %403 = vmatpush2.msra.mxu0 0.0
      %404 = vmatprep.subr.mxu0 0.0
      %405 = vmatpush2.msra.mxu0 0.0
      %406 = vmatprep.subr.mxu0 0.0
      %407 = vmatpush2.msra.mxu0 0.0
      %408 = vmatprep.subr.mxu0 0.0
      %409 = vmatpush2.msra.mxu0 0.0
      %410 = vmatprep.subr.mxu0 0.0
      %411 = vmatpush2.msra.mxu0 0.0
      %412 = vmatprep.subr.mxu0 0.0
      %413 = vmatpush2.msra.mxu0 0.0
      %414 = vmatprep.mubr.f32.mxu0 0.0
      %415 = vmatmul.mubr.f32.gmra.mxu0 %v327
      %v416 = vpop.f32.mrf.mxu0
      %v417 = vadd.f32 0.0, %v416
      %v418 = vpop.f32.mrf.mxu0
      %419 = vmatprep.mubr.f32.mxu0 0.0
      %420 = vmatmul.mubr.f32.gmra.mxu0 %v330
      %v421 = vpop.f32.mrf.mxu0
      %v422 = vadd.f32 0.0, %v421
      %v423 = vpop.f32.mrf.mxu0
      %424 = vmatprep.mubr.f32.mxu0 0.0
      %425 = vmatmul.mubr.f32.gmra.mxu0 %v333
      %v426 = vpop.f32.mrf.mxu0
      %v427 = vadd.f32 0.0, %v426
      %v428 = vpop.f32.mrf.mxu0
      %429 = vmatprep.mubr.f32.mxu0 0.0
      %430 = vmatmul.mubr.f32.gmra.mxu0 %v336
      %v431 = vpop.f32.mrf.mxu0
      %v432 = vadd.f32 0.0, %v431
      %v433 = vpop.f32.mrf.mxu0
      %434 = vmatprep.mubr.f32.mxu0 0.0
      %435 = vmatmul.mubr.f32.gmra.mxu0 %v339
      %v436 = vpop.f32.mrf.mxu0
      %v437 = vadd.f32 0.0, %v436
      %v438 = vpop.f32.mrf.mxu0
      %439 = vmatprep.mubr.f32.mxu0 0.0
      %440 = vmatmul.mubr.f32.gmra.mxu0 %v342
      %v441 = vpop.f32.mrf.mxu0
      %v442 = vadd.f32 0.0, %v441
      %v443 = vpop.f32.mrf.mxu0
      %444 = vmatprep.mubr.f32.mxu0 0.0
      %445 = vmatmul.mubr.f32.gmra.mxu0 %v345
      %v446 = vpop.f32.mrf.mxu0
      %v447 = vadd.f32 0.0, %v446
      %v448 = vpop.f32.mrf.mxu0
      %449 = vmatprep.mubr.f32.mxu0 0.0
      %450 = vmatmul.mubr.f32.gmra.mxu0 %v348
      %v451 = vpop.f32.mrf.mxu0
      %v452 = vadd.f32 0.0, %v451
      %v453 = vpop.f32.mrf.mxu0
      %454 = vdwg.mxu0
      %v455 = vld [vmem:[%s2] sm:$0x1]
      %v456 = vld [vmem:[%s2 + $0x1] sm:$0x1]
      %v457 = vlaneseq
      %v458 = vshrl.u32 %v457, 7
      %v459 = vsub.s32 0, %v458
      %v460 = vrot.slane %v455, %v459
      %v461 = vmul.f32 %v243, %v460
      %v462 = vmul.f32 %v244, %v460
      %v463 = vmul.f32 %v245, %v460
      %v464 = vmul.f32 %v246, %v460
      %v465 = vmul.f32 %v247, %v460
      %v466 = vmul.f32 %v248, %v460
      %v467 = vmul.f32 %v249, %v460
      %v468 = vmul.f32 %v250, %v460
      %v469 = vsub.f32 %v417, %v461
      %v470 = vsub.f32 %v422, %v462
      %v471 = vsub.f32 %v427, %v463
      %v472 = vsub.f32 %v432, %v464
      %v473 = vsub.f32 %v437, %v465
      %v474 = vsub.f32 %v442, %v466
      %v475 = vsub.f32 %v447, %v467
      %v476 = vsub.f32 %v452, %v468
      %v477 = vmul.f32 %v316, %v469
      %v478 = vmul.f32 %v317, %v470
      %v479 = vmul.f32 %v318, %v471
      %v480 = vmul.f32 %v319, %v472
      %v481 = vmul.f32 %v320, %v473
      %v482 = vmul.f32 %v321, %v474
      %v483 = vmul.f32 %v322, %v475
      %v484 = vmul.f32 %v323, %v476
      %v485 = vlaneseq
      %v486 = vshrl.u32 %v485, 7
      %v487 = vsub.s32 0, %v486
      %v488 = vrot.slane %v456, %v487
      %v489 = vadd.f32 %v477, %v488
      %v490 = vadd.f32 %v478, %v488
      %v491 = vadd.f32 %v479, %v488
      %v492 = vadd.f32 %v480, %v488
      %v493 = vadd.f32 %v481, %v488
      %v494 = vadd.f32 %v482, %v488
      %v495 = vadd.f32 %v483, %v488
      %v496 = vadd.f32 %v484, %v488
      %vm497 = vcmask 64512
      %498 = vst.msk [vmem:[%s208] sm:$0xff] %vm497, %v489
      %499 = vst.msk [vmem:[%s208 + $0x8] sm:$0xff] %vm497, %v490
      %500 = vst.msk [vmem:[%s208 + $0x10] sm:$0xff] %vm497, %v491
      %501 = vst.msk [vmem:[%s208 + $0x18] sm:$0xff] %vm497, %v492
      %502 = vst.msk [vmem:[%s208 + $0x20] sm:$0xff] %vm497, %v493
      %503 = vst.msk [vmem:[%s208 + $0x28] sm:$0xff] %vm497, %v494
      %504 = vst.msk [vmem:[%s208 + $0x30] sm:$0xff] %vm497, %v495
      %505 = vst.msk [vmem:[%s208 + $0x38] sm:$0xff] %vm497, %v496
      %s506 = smul.u32 8, %s19
      %p507 = scmp.lt.s32.totalorder %s18, 1
      %s508 = scalar_select %p507, %s18, 1
      %p509 = scmp.lt.s32.totalorder %s506, 7
      %s510 = scalar_select %p509, %s506, 7
      %s511 = smul.addr %s508, 8
      %s512 = sadd.s32 %s510, %s511
      %s513 = smul.addr %s512, 8
      %s514 = scalar_lea.vmem %s3, %s513
      // Predicated region
      $region33: #{tpu_custom_call.1} parent=31 // pred_check
        %p515 = pneg %p116
      $region34: #{tpu_custom_call.1} parent=31 // pred_check_branch
        %517 = sbr.rel (%p515) target = $region36
      $region35: #{tpu_custom_call.1} parent=31 // pred_region
        %s518 = smul.u32 8, %s19
      $region36: #{tpu_custom_call.1} parent=31 // pred_fallthru
        _
    $region32: #{tpu_custom_call.1} parent=5 // pred_fallthru
      _
    %p519 = scmp.le.s32.totalorder 2, %s9
    // Predicated region
    $region37: #{tpu_custom_call.1} parent=5 // pred_check
      %p520 = pneg %p519
    $region38: #{tpu_custom_call.1} parent=5 // pred_check_branch
      %522 = sbr.rel (%p520) target = $region40
    $region39: #{tpu_custom_call.1} parent=5 // pred_region
      %s523 = ssub.s32 %s9, 2
      // Predicated region
      $region41: #{tpu_custom_call.1} parent=39 // pred_check
        %p524 = pneg %p122
      $region42: #{tpu_custom_call.1} parent=39 // pred_check_branch
        %526 = sbr.rel (%p524) target = $region44
      $region43: #{tpu_custom_call.1} parent=39 // pred_region
        %s527 = smul.u32 8, %s21
        %p528 = scmp.lt.s32.totalorder %s20, 1
        %s529 = scalar_select %p528, %s20, 1
        %p530 = scmp.lt.s32.totalorder %s527, 7
        %s531 = scalar_select %p530, %s527, 7
        %s532 = smul.addr %s529, 8
        %s533 = sadd.s32 %s531, %s532
        %s534 = smul.addr %s533, 8
        %s535 = scalar_lea.vmem %s3, %s534
      $region44: #{tpu_custom_call.1} parent=39 // pred_fallthru
        _
    $region40: #{tpu_custom_call.1} parent=5 // pred_fallthru
      _
  $region6: #{tpu_custom_call.1} parent=0 // loop_footer
    %s13 = sadd.s32 1, %s9
  $region7: #{tpu_custom_call.1} parent=0 // loop_footer_branch
    %8 = sbr.rel target = $region3
  $region8: #{tpu_custom_call.1} parent=0 // loop_exit
    _

</llo_original>
